<compile_context>
chip_gen: v7x
topology: tpu7x:2x2x1
jax: 0.10.0
libtpu: 0.0.40
codegen_flags: <defaults>
</compile_context>

<pallas_src>
import functools
import math

import jax
import jax.numpy as jnp
from jax import lax
from jax.experimental import pallas as pl
from jax.experimental.pallas import tpu as pltpu


def _vn_relu_kernel(x_ref, wu_ref, g_ref, o_ref, *, dc, eps, fuse_g,
                    compute_dtype):
    # x_ref : (tm, dc)            flattened input rows, dc = dim * coords
    # wu_ref: (dc, 2*dc)          [kron(W.T, I_C) | kron(U.T, I_C)]
    # g_ref : (2dc, 2dc) if fuse_g else (dc, dc): group-sum+broadcast matrix
    # o_ref : (tm, dc)
    x = x_ref[...].astype(compute_dtype)
    # Single fused MXU pass for q and k (N = 2*dc).
    y = jnp.dot(x, wu_ref[...], preferred_element_type=jnp.float32)  # (tm, 2dc)
    q = y[:, :dc]
    k = y[:, dc:]

    if fuse_g:
        # One MXU pass computing both per-channel reductions:
        # [q*k | k*k] @ blockdiag(G, G)  ->  [qk_bcast | ksq_bcast]
        r = jnp.concatenate([q * k, k * k], axis=-1).astype(compute_dtype)
        s = jnp.dot(r, g_ref[...], preferred_element_type=jnp.float32)
        qk, ksq = s[:, :dc], s[:, dc:]
    else:
        # v5e path: two 96-wide G dots (pass-neutral on a 128-wide MXU).
        g = g_ref[...]
        qk = jnp.dot((q * k).astype(compute_dtype), g,
                     preferred_element_type=jnp.float32)
        ksq = jnp.dot((k * k).astype(compute_dtype), g,
                      preferred_element_type=jnp.float32)

    # 1 / max(||k||, eps)  ==  rsqrt(max(||k||^2, eps^2))  (single EUP op).
    inv_norm = lax.rsqrt(jnp.maximum(ksq, eps * eps))
    q_proj = q - (qk * inv_norm) * k
    o_ref[...] = jnp.where(qk >= 0.0, q, q_proj).astype(o_ref.dtype)


def _on_v5():
    try:
        return "v5" in jax.devices()[0].device_kind.lower()
    except Exception:
        return False


def vn_relu(x, W, U, eps=1e-6, *, tm=4096, fuse_g=None,
            compute_dtype=jnp.bfloat16):
    """x: (..., dim, coords), W/U: (dim, dim). Returns (..., dim, coords)."""
    *lead, dim, coords = x.shape
    dc = dim * coords
    M = math.prod(lead) if lead else 1

    if fuse_g is None:
        fuse_g = not _on_v5()   # fused 2dc-wide G dot only on 256-wide MXUs

    # Contiguous flatten (no transpose, no pad).
    x2 = x.reshape(M, dc)

    # Expanded weights: q2[n, o*C + c] = sum_i x2[n, i*C + c] * W[o, i]
    eye_c = jnp.eye(coords, dtype=jnp.float32)
    w_exp = jnp.kron(jnp.asarray(W, jnp.float32).T, eye_c)           # (dc, dc)
    u_exp = jnp.kron(jnp.asarray(U, jnp.float32).T, eye_c)           # (dc, dc)
    wu = jnp.concatenate([w_exp, u_exp], axis=1).astype(compute_dtype)  # (dc, 2dc)

    # Group-sum + broadcast over the C coord lanes of each output channel.
    g = jnp.kron(jnp.eye(dim, dtype=jnp.float32),
                 jnp.ones((coords, coords), dtype=jnp.float32))      # (dc, dc)
    g_mat = (jnp.kron(jnp.eye(2, dtype=jnp.float32), g) if fuse_g
             else g).astype(compute_dtype)

    # Row tile: large (amortize ~0.35us/step), multiple of 8, and at least 2
    # grid steps whenever M allows so the "parallel" axis can be sharded
    # across v7x's two TensorCores.  Pallas handles the partial last block.
    if M > 8:
        two_step = ((pl.cdiv(M, 2) + 7) // 8) * 8
        tm_eff = max(8, min(int(tm), two_step))
    else:
        tm_eff = 8
    grid = (pl.cdiv(M, tm_eff),)

    kernel = functools.partial(_vn_relu_kernel, dc=dc, eps=float(eps),
                               fuse_g=fuse_g, compute_dtype=compute_dtype)

    out2 = pl.pallas_call(
        kernel,
        out_shape=jax.ShapeDtypeStruct((M, dc), x.dtype),
        grid_spec=pltpu.PrefetchScalarGridSpec(
            num_scalar_prefetch=0,
            grid=grid,
            in_specs=[
                pl.BlockSpec((tm_eff, dc), lambda i: (i, 0)),
                pl.BlockSpec(wu.shape, lambda i: (0, 0)),
                pl.BlockSpec(g_mat.shape, lambda i: (0, 0)),
            ],
            out_specs=pl.BlockSpec((tm_eff, dc), lambda i: (i, 0)),
        ),
        compiler_params=pltpu.CompilerParams(
            dimension_semantics=("parallel",),
            vmem_limit_bytes=32 * 1024 * 1024),
    )(x2, wu, g_mat)

    return out2.reshape(*lead, dim, coords)


def vn_relu_ref(x, W, U, eps=1e-6):
    q = jnp.einsum('...ic,oi->...oc', x, W)
    k = jnp.einsum('...ic,oi->...oc', x, U)
    qk = jnp.sum(q * k, axis=-1, keepdims=True)
    k_norm = jnp.maximum(jnp.linalg.norm(k, axis=-1, keepdims=True), eps)
    q_proj = q - jnp.sum(q * (k / k_norm), axis=-1, keepdims=True) * k
    return jnp.where(qk >= 0.0, q, q_proj)


def _assert_close(out, ref, name, tol=3e-2):
    # Scale-relative checks: the kernel runs its matmuls with bf16 operands
    # (f32 accumulation), so per-element errors are ~0.5% of the local scale.
    out = jnp.asarray(out, jnp.float32)
    ref = jnp.asarray(ref, jnp.float32)
    scale = jnp.maximum(jnp.max(jnp.abs(ref)), 1e-3)
    max_err = float(jnp.max(jnp.abs(out - ref)) / scale)
    rms_err = float(jnp.sqrt(jnp.mean((out - ref) ** 2)
                             / jnp.maximum(jnp.mean(ref ** 2), 1e-12)))
    assert max_err < tol and rms_err < tol, (name, max_err, rms_err)


if __name__ == "__main__":
    key = jax.random.PRNGKey(0)
    kx, kw, ku, kx2 = jax.random.split(key, 4)

    batch, seq, dim, coords = 2, 8, 32, 3
    eps = 1e-6

    x = jax.random.normal(kx, (batch, seq, dim, coords), dtype=jnp.float32)
    W = jax.random.normal(kw, (dim, dim), dtype=jnp.float32)
    U = jax.random.normal(ku, (dim, dim), dtype=jnp.float32)

    out = jax.block_until_ready(vn_relu(x, W, U, eps))
    assert out.shape == (batch, seq, dim, coords), out.shape
    _assert_close(out, vn_relu_ref(x, W, U, eps), "main")

    # Multi-step grid with a partial last block (M=26, tm=16); exercise both
    # the fused-G (v6e/v7x) and split-G (v5e) reduction paths.
    x_b = jax.random.normal(kx2, (2, 13, dim, coords), dtype=jnp.float32)
    ref_b = vn_relu_ref(x_b, W, U, eps)
    out_f = jax.block_until_ready(vn_relu(x_b, W, U, eps, tm=16, fuse_g=True))
    _assert_close(out_f, ref_b, "fused_g")
    out_s = jax.block_until_ready(vn_relu(x_b, W, U, eps, tm=16, fuse_g=False))
    _assert_close(out_s, ref_b, "split_g")

    print("KERNEL_OK")
</pallas_src>

<mosaic_0001>
module attributes {stable_mosaic.version = 11 : i64} {
  func.func @_vn_relu_kernel(%arg0: i32, %arg1: memref<8x96xf32, #tpu.memory_space<vmem>>, %arg2: memref<96x192xbf16, #tpu.memory_space<vmem>>, %arg3: memref<192x192xbf16, #tpu.memory_space<vmem>>, %arg4: memref<8x96xf32, #tpu.memory_space<vmem>>) attributes {dimension_semantics = [#tpu.dimension_semantics<parallel>], iteration_bounds = array<i64: 2>, scalar_prefetch = 0 : i64, scratch_operands = 0 : i64, tpu.core_type = #tpu.core_type<tc>, window_params = [{transform_indices = @transform_0, window_bounds = array<i64: 8, 96>}, {pipeline_mode = #tpu.pipeline_mode<synchronous>, transform_indices = @transform_1, window_bounds = array<i64: 96, 192>}, {pipeline_mode = #tpu.pipeline_mode<synchronous>, transform_indices = @transform_2, window_bounds = array<i64: 192, 192>}, {transform_indices = @transform_3, window_bounds = array<i64: 8, 96>}]} {
    %c0 = arith.constant 0 : index
    %c0_0 = arith.constant 0 : index
    %0 = vector.load %arg1[%c0, %c0_0] : memref<8x96xf32, #tpu.memory_space<vmem>>, vector<8x96xf32>
    %1 = arith.truncf %0 : vector<8x96xf32> to vector<8x96xbf16>
    %c0_1 = arith.constant 0 : index
    %c0_2 = arith.constant 0 : index
    %2 = vector.load %arg2[%c0_1, %c0_2] : memref<96x192xbf16, #tpu.memory_space<vmem>>, vector<96x192xbf16>
    %cst = arith.constant dense<0.000000e+00> : vector<8x192xf32>
    %3 = tpu.matmul %1, %2, %cst {dimension_numbers = #tpu.dot_dimension_numbers<[1], [0], [0], [1], [0, 0, 1, 1], [], []>} : vector<8x96xbf16>, vector<96x192xbf16>, vector<8x192xf32> -> vector<8x192xf32>
    %4 = vector.extract_strided_slice %3 {offsets = [0, 0], sizes = [8, 96], strides = [1, 1]} : vector<8x192xf32> to vector<8x96xf32>
    %5 = vector.extract_strided_slice %3 {offsets = [0, 96], sizes = [8, 96], strides = [1, 1]} : vector<8x192xf32> to vector<8x96xf32>
    %6 = arith.mulf %4, %5 : vector<8x96xf32>
    %7 = arith.mulf %5, %5 : vector<8x96xf32>
    %8 = tpu.concatenate %6, %7 in 1 : vector<8x96xf32>, vector<8x96xf32> -> vector<8x192xf32>
    %9 = arith.truncf %8 : vector<8x192xf32> to vector<8x192xbf16>
    %c0_3 = arith.constant 0 : index
    %c0_4 = arith.constant 0 : index
    %10 = vector.load %arg3[%c0_3, %c0_4] : memref<192x192xbf16, #tpu.memory_space<vmem>>, vector<192x192xbf16>
    %cst_5 = arith.constant dense<0.000000e+00> : vector<8x192xf32>
    %11 = tpu.matmul %9, %10, %cst_5 {dimension_numbers = #tpu.dot_dimension_numbers<[1], [0], [0], [1], [0, 0, 1, 1], [], []>} : vector<8x192xbf16>, vector<192x192xbf16>, vector<8x192xf32> -> vector<8x192xf32>
    %12 = vector.extract_strided_slice %11 {offsets = [0, 0], sizes = [8, 96], strides = [1, 1]} : vector<8x192xf32> to vector<8x96xf32>
    %13 = vector.extract_strided_slice %11 {offsets = [0, 96], sizes = [8, 96], strides = [1, 1]} : vector<8x192xf32> to vector<8x96xf32>
    %cst_6 = arith.constant 9.99999996E-13 : f32
    %14 = vector.broadcast %cst_6 : f32 to vector<8x96xf32>
    %15 = arith.maximumf %13, %14 : vector<8x96xf32>
    %16 = math.rsqrt %15 : vector<8x96xf32>
    %17 = arith.mulf %12, %16 : vector<8x96xf32>
    %18 = arith.mulf %17, %5 : vector<8x96xf32>
    %19 = arith.subf %4, %18 : vector<8x96xf32>
    %cst_7 = arith.constant 0.000000e+00 : f32
    %20 = vector.broadcast %cst_7 : f32 to vector<8x96xf32>
    %21 = arith.cmpf oge, %12, %20 : vector<8x96xf32>
    %22 = arith.select %21, %4, %19 : vector<8x96xi1>, vector<8x96xf32>
    %c0_8 = arith.constant 0 : index
    %c0_9 = arith.constant 0 : index
    %23 = vector.load %arg4[%c0_8, %c0_9] : memref<8x96xf32, #tpu.memory_space<vmem>>, vector<8x96xf32>
    tpu.vector_store %arg4[%c0_8, %c0_9], %22 {strides = array<i32>} : memref<8x96xf32, #tpu.memory_space<vmem>>, vector<8x96xf32>,
    return
  }
  func.func @transform_0(%arg0: i32) -> (i32, i32) {
    %c0_i32 = arith.constant 0 : i32
    %c0_i32_0 = arith.constant 0 : i32
    return %arg0, %c0_i32 : i32, i32
  }
  func.func @transform_1(%arg0: i32) -> (i32, i32) {
    %c0_i32 = arith.constant 0 : i32
    %c0_i32_0 = arith.constant 0 : i32
    %c0_i32_1 = arith.constant 0 : i32
    return %c0_i32, %c0_i32_0 : i32, i32
  }
  func.func @transform_2(%arg0: i32) -> (i32, i32) {
    %c0_i32 = arith.constant 0 : i32
    %c0_i32_0 = arith.constant 0 : i32
    %c0_i32_1 = arith.constant 0 : i32
    return %c0_i32, %c0_i32_0 : i32, i32
  }
  func.func @transform_3(%arg0: i32) -> (i32, i32) {
    %c0_i32 = arith.constant 0 : i32
    %c0_i32_0 = arith.constant 0 : i32
    return %arg0, %c0_i32 : i32, i32
  }
}

</mosaic_0001>

<llo_original>
// kernel: tpu_custom_call.1
$region0: #{tpu_custom_call.1}
  #allocation0 [shape = 'u32[]', space=smem, size = 0x4, offset = 0x4, fixed_abs, tag = 'smem constant byte address 0x4 - core index']
  #allocation1 [shape = 'u32[144,128]{1,0:T(1,128)}', space=vmem, size = 0x12000, scoped, tag = 'internal scratch']
  %s0 = inlined_call_operand.hbm [shape: f32[16,96], index: 0, kind: input, shape index: {}]
  %s1 = inlined_call_operand.hbm [shape: bf16[96,192], index: 1, kind: input, shape index: {}]
  %s2 = inlined_call_operand.hbm [shape: bf16[192,192], index: 2, kind: input, shape index: {}]
  %s3 = inlined_call_operand.hbm [shape: f32[16,96], index: 3, kind: output, shape index: {}]
  %s4 = sld [smem:[#allocation0]]
  $region57: #{tpu_custom_call.1} parent=0
    _
  %s6 = ssub.s32 1, %s4
  %s7 = scalar_select 0, %s6, %s4
  $region1: #{tpu_custom_call.1} parent=0
    #allocation2 [shape = 'u8[8192]{0}', space=vmem, size = 0x2000, scoped, tag = 'input window, operand 0']
    #allocation3 [shape = 's32[2]{0}', space=sflag, size = 0x8, scoped, tag = 'scoped memory for tpu_custom_call.1']
    #allocation4 [shape = 's32[2]{0}', space=sflag, size = 0x8, scoped, tag = 'scoped memory for tpu_custom_call.1']
    #allocation5 [shape = 'u8[49152]{0}', space=vmem, size = 0xc000, scoped, tag = 'input window, operand 1, single buffered']
    #allocation6 [shape = 's32[1]{0}', space=sflag, size = 0x4, scoped, tag = 'scoped memory for tpu_custom_call.1']
    #allocation7 [shape = 'u8[98304]{0}', space=vmem, size = 0x18000, scoped, tag = 'input window, operand 2, single buffered']
    #allocation8 [shape = 'u8[8192]{0}', space=vmem, size = 0x2000, scoped, tag = 'output window, operand 0']
    %8 = vsyncpa [#allocation3], 0
    %s9 = scalar_lea.sflag [#allocation3], 1
    %10 = vsyncpa %s9, 0
    %11 = vsyncpa [#allocation6], 0
    %12 = vsyncpa [#allocation4], 0
    %s13 = scalar_lea.sflag [#allocation4], 1
    %14 = vsyncpa %s13, 0
    loop: start=0, step=1, limit=4
    $region2: #{tpu_custom_call.1} parent=1 // loop_pre_header
      _
    $region3: #{tpu_custom_call.1} parent=1 // loop_header
      %s16 = sphi 0, %s20
      %p17 = scmp.ge.s32.totalorder %s16, 4
      %s26 = sphi 0, %s28
      %s29 = sphi 0, %s26
      %s30 = sphi 0, %s29
      %s46 = sphi 0, %s30
      %s50 = sphi 0, %s50
      %s52 = sphi 0, %s50
      %s53 = sphi 0, %s52
      %s67 = sphi 0, %s53
      %s71 = sphi 0, %s71
      %s73 = sphi 0, %s71
      %s74 = sphi 0, %s73
      %s88 = sphi 0, %s74
      %s94 = sphi 0, %s96
      %s97 = sphi 0, %s94
      %s98 = sphi 0, %s97
      %s114 = sphi 0, %s98
    $region4: #{tpu_custom_call.1} parent=1 // loop_header_branch
      %19 = sbr.rel (%p17) target = $region8
    $region5: #{tpu_custom_call.1} parent=1 // loop_body
      %s21 = ssub.s32 %s16, 1
      %s22 = ssub.s32 %s16, 2
      %s23 = sadd.s32 %s16, 1
      %s24 = ssub.s32 %s16, %s23
      %p25 = scmp.eq.s32.totalorder %s24, 0
      %s27 = sadd.s32 %s26, 1
      %s28 = scalar_select %p25, %s26, %s27
      %p31 = pneg %p25
      %p32 = scmp.eq.s32.totalorder %s16, 1
      %p33 = por %p31, %p32
      %p34 = scmp.ne.s32.totalorder %s26, %s29
      %p35 = scmp.eq.s32.totalorder %s16, 0
      %p36 = por %p34, %p35
      %p37 = scmp.ne.s32.totalorder %s26, %s29
      %p38 = scmp.eq.s32.totalorder %s21, 1
      %p39 = por %p37, %p38
      %p40 = scmp.ne.s32.totalorder %s29, %s30
      %p41 = scmp.eq.s32.totalorder %s21, 0
      %p42 = por %p40, %p41
      %p43 = scmp.ne.s32.totalorder %s29, %s30
      %p44 = scmp.eq.s32.totalorder %s22, 1
      %p45 = por %p43, %p44
      %p47 = scmp.ne.s32.totalorder %s30, %s46
      %p48 = scmp.eq.s32.totalorder %s22, 0
      %p49 = por %p47, %p48
      %s51 = sadd.s32 %s50, 1
      %p54 = scmp.eq.s32.totalorder %s16, 1
      %p55 = scmp.ne.s32.totalorder %s50, %s52
      %p56 = scmp.eq.s32.totalorder %s16, 0
      %p57 = por %p55, %p56
      %p58 = scmp.ne.s32.totalorder %s50, %s52
      %p59 = scmp.eq.s32.totalorder %s21, 1
      %p60 = por %p58, %p59
      %p61 = scmp.ne.s32.totalorder %s52, %s53
      %p62 = scmp.eq.s32.totalorder %s21, 0
      %p63 = por %p61, %p62
      %p64 = scmp.ne.s32.totalorder %s52, %s53
      %p65 = scmp.eq.s32.totalorder %s22, 1
      %p66 = por %p64, %p65
      %p68 = scmp.ne.s32.totalorder %s53, %s67
      %p69 = scmp.eq.s32.totalorder %s22, 0
      %p70 = por %p68, %p69
      %s72 = sadd.s32 %s71, 1
      %p75 = scmp.eq.s32.totalorder %s16, 1
      %p76 = scmp.ne.s32.totalorder %s71, %s73
      %p77 = scmp.eq.s32.totalorder %s16, 0
      %p78 = por %p76, %p77
      %p79 = scmp.ne.s32.totalorder %s71, %s73
      %p80 = scmp.eq.s32.totalorder %s21, 1
      %p81 = por %p79, %p80
      %p82 = scmp.ne.s32.totalorder %s73, %s74
      %p83 = scmp.eq.s32.totalorder %s21, 0
      %p84 = por %p82, %p83
      %p85 = scmp.ne.s32.totalorder %s73, %s74
      %p86 = scmp.eq.s32.totalorder %s22, 1
      %p87 = por %p85, %p86
      %p89 = scmp.ne.s32.totalorder %s74, %s88
      %p90 = scmp.eq.s32.totalorder %s22, 0
      %p91 = por %p89, %p90
      %s92 = ssub.s32 %s16, %s23
      %p93 = scmp.eq.s32.totalorder %s92, 0
      %s95 = sadd.s32 %s94, 1
      %s96 = scalar_select %p93, %s94, %s95
      %p99 = pneg %p93
      %p100 = scmp.eq.s32.totalorder %s16, 1
      %p101 = por %p99, %p100
      %p102 = scmp.ne.s32.totalorder %s94, %s97
      %p103 = scmp.eq.s32.totalorder %s16, 0
      %p104 = por %p102, %p103
      %p105 = scmp.ne.s32.totalorder %s94, %s97
      %p106 = scmp.eq.s32.totalorder %s21, 1
      %p107 = por %p105, %p106
      %p108 = scmp.ne.s32.totalorder %s97, %s98
      %p109 = scmp.eq.s32.totalorder %s21, 0
      %p110 = por %p108, %p109
      %p111 = scmp.ne.s32.totalorder %s97, %s98
      %p112 = scmp.eq.s32.totalorder %s22, 1
      %p113 = por %p111, %p112
      %p115 = scmp.ne.s32.totalorder %s98, %s114
      %p116 = scmp.eq.s32.totalorder %s22, 0
      %p117 = por %p115, %p116
      %p118 = scmp.le.s32.totalorder 1, %s16
      %p119 = scmp.lt.s32.totalorder %s16, 3
      %p120 = pnand %p118, %p119
      %p121 = pneg %p120
      // Predicated region
      $region9: #{tpu_custom_call.1} parent=5 // pred_check
        _
      $region10: #{tpu_custom_call.1} parent=5 // pred_check_branch
        %123 = sbr.rel (%p120) target = $region12
      $region11: #{tpu_custom_call.1} parent=5 // pred_region
        %s124 = ssub.s32 %s16, 1
        // Predicated region
        $region13: #{tpu_custom_call.1} parent=11 // pred_check
          %p125 = pneg %p63
        $region14: #{tpu_custom_call.1} parent=11 // pred_check_branch
          %127 = sbr.rel (%p125) target = $region16
        $region15: #{tpu_custom_call.1} parent=11 // pred_region
          %s129 = ssub.s32 1536, 1536
          %130 = vsyncadd [#allocation6], %s129
          %s131 = sshll.u32 [#allocation5], 4
          %s132 = int_to_ptr.vmem [resolvable:$true] %s131
          %137 = dma.hbm_to_vmem [thread:$0]  %s1, 1536, %s132, [#allocation6], 128, 128, 8
        $region16: #{tpu_custom_call.1} parent=11 // pred_fallthru
          _
        // Predicated region
        $region17: #{tpu_custom_call.1} parent=11 // pred_check
          %p138 = pneg %p84
        $region18: #{tpu_custom_call.1} parent=11 // pred_check_branch
          %140 = sbr.rel (%p138) target = $region20
        $region19: #{tpu_custom_call.1} parent=11 // pred_region
          %s142 = ssub.s32 3072, 3072
          %143 = vsyncadd [#allocation6], %s142
          %s144 = sshll.u32 [#allocation7], 4
          %s145 = int_to_ptr.vmem [resolvable:$true] %s144
          %150 = dma.hbm_to_vmem [thread:$0]  %s2, 3072, %s145, [#allocation6], 128, 128, 8
        $region20: #{tpu_custom_call.1} parent=11 // pred_fallthru
          _
      $region12: #{tpu_custom_call.1} parent=5 // pred_fallthru
        _
      %p151 = scmp.lt.s32.totalorder %s16, 2
      // Predicated region
      $region21: #{tpu_custom_call.1} parent=5 // pred_check
        %p152 = pneg %p151
      $region22: #{tpu_custom_call.1} parent=5 // pred_check_branch
        %154 = sbr.rel (%p152) target = $region24
      $region23: #{tpu_custom_call.1} parent=5 // pred_region
        // Predicated region
        $region25: #{tpu_custom_call.1} parent=23 // pred_check
          %p155 = pneg %p36
        $region26: #{tpu_custom_call.1} parent=23 // pred_check_branch
          %157 = sbr.rel (%p155) target = $region28
        $region27: #{tpu_custom_call.1} parent=23 // pred_region
          %s158 = sand.u32 %s26, 1
          %s159 = scalar_lea.sflag [#allocation3], %s158
          %s160 = sand.u32 %s26, 1
          %s161 = smul.addr %s160, 8
          %s162 = scalar_lea.vmem [#allocation2], %s161
          %s164 = ssub.s32 128, 128
          %165 = vsyncadd %s159, %s164
          %s166 = smul.addr %s16, 128
          %s167 = scalar_lea.hbm %s0, %s166
          %s169 = sshll.u32 %s162, 4
          %s170 = int_to_ptr.vmem [resolvable:$true] %s169
          %172 = dma.hbm_to_vmem [thread:$0]  %s167, 128, %s170, %s159
        $region28: #{tpu_custom_call.1} parent=23 // pred_fallthru
          _
      $region24: #{tpu_custom_call.1} parent=5 // pred_fallthru
        _
      %p173 = scmp.le.s32.totalorder 1, %s16
      %p174 = scmp.lt.s32.totalorder %s16, 3
      %p175 = pnand %p173, %p174
      %p176 = pneg %p175
      // Predicated region
      $region29: #{tpu_custom_call.1} parent=5 // pred_check
        _
      $region30: #{tpu_custom_call.1} parent=5 // pred_check_branch
        %178 = sbr.rel (%p175) target = $region32
      $region31: #{tpu_custom_call.1} parent=5 // pred_region
        %s179 = ssub.s32 %s16, 1
        %s180 = sand.u32 %s29, 1
        %s181 = scalar_lea.sflag [#allocation3], %s180
        %s182 = sand.u32 %s29, 1
        %s183 = smul.addr %s182, 8
        %s184 = scalar_lea.vmem [#allocation2], %s183
        // Predicated region
        $region33: #{tpu_custom_call.1} parent=31 // pred_check
          %p185 = pneg %p42
        $region34: #{tpu_custom_call.1} parent=31 // pred_check_branch
          %187 = sbr.rel (%p185) target = $region36
        $region35: #{tpu_custom_call.1} parent=31 // pred_region
          %188 = dma.done %s181, 128
        $region36: #{tpu_custom_call.1} parent=31 // pred_fallthru
          _
        // Predicated region
        $region37: #{tpu_custom_call.1} parent=31 // pred_check
          %p189 = pneg %p63
        $region38: #{tpu_custom_call.1} parent=31 // pred_check_branch
          %191 = sbr.rel (%p189) target = $region40
        $region39: #{tpu_custom_call.1} parent=31 // pred_region
          %192 = dma.done [#allocation6], 1536
        $region40: #{tpu_custom_call.1} parent=31 // pred_fallthru
          _
        // Predicated region
        $region41: #{tpu_custom_call.1} parent=31 // pred_check
          %p193 = pneg %p84
        $region42: #{tpu_custom_call.1} parent=31 // pred_check_branch
          %195 = sbr.rel (%p193) target = $region44
        $region43: #{tpu_custom_call.1} parent=31 // pred_region
          %196 = dma.done [#allocation6], 3072
        $region44: #{tpu_custom_call.1} parent=31 // pred_fallthru
          _
        %s197 = sand.u32 %s29, 1
        %s198 = scalar_lea.sflag [#allocation3], %s197
        %s199 = sand.u32 %s29, 1
        %s200 = smul.addr %s199, 8
        %s201 = scalar_lea.vmem [#allocation2], %s200
        %p202 = pneg %p42
        %p203 = pneg %p39
        %p204 = pneg %p63
        %p205 = pneg %p60
        %p206 = pneg %p84
        %p207 = pneg %p81
        %p208 = pneg %p110
        %p209 = pneg %p107
        %s210 = sand.u32 %s97, 1
        %s211 = scalar_lea.sflag [#allocation4], %s210
        %s212 = sand.u32 %s97, 1
        %s213 = smul.addr %s212, 8
        %s214 = scalar_lea.vmem [#allocation8], %s213
        %v216 = vld [vmem:[%s184] sm:$0xff]
        %v217 = vpack.c.bf16 %v216, %v216
        %v218 = vld [vmem:[#allocation5] sm:$0xff]
        %v219 = vld [vmem:[#allocation5 + $0x8] sm:$0xff]
        %v220 = vld [vmem:[#allocation5 + $0x10] sm:$0xff]
        %v221 = vld [vmem:[#allocation5 + $0x18] sm:$0xff]
        %v222 = vld [vmem:[#allocation5 + $0x20] sm:$0xff]
        %v223 = vld [vmem:[#allocation5 + $0x28] sm:$0xff]
        %v224 = vld [vmem:[#allocation5 + $0x30] sm:$0xff]
        %v225 = vld [vmem:[#allocation5 + $0x38] sm:$0xff]
        %v226 = vld [vmem:[#allocation5 + $0x40] sm:$0xff]
        %v227 = vld [vmem:[#allocation5 + $0x48] sm:$0xff]
        %v228 = vld [vmem:[#allocation5 + $0x50] sm:$0xff]
        %v229 = vld [vmem:[#allocation5 + $0x58] sm:$0xff]
        %v242 = vunpack.c.l.b16 %v218
        %v243 = vunpack.c.h.b16 %v218
        %v244 = vunpack.c.l.b16 %v219
        %v245 = vunpack.c.h.b16 %v219
        %v246 = vunpack.c.l.b16 %v220
        %v247 = vunpack.c.h.b16 %v220
        %v248 = vunpack.c.l.b16 %v221
        %v249 = vunpack.c.h.b16 %v221
        %v250 = vunpack.c.l.b16 %v222
        %v251 = vunpack.c.h.b16 %v222
        %v252 = vunpack.c.l.b16 %v223
        %v253 = vunpack.c.h.b16 %v223
        %v254 = vunpack.c.l.b16 %v224
        %v255 = vunpack.c.h.b16 %v224
        %v256 = vunpack.c.l.b16 %v225
        %v257 = vunpack.c.h.b16 %v225
        %v258 = vunpack.c.l.b16 %v226
        %v259 = vunpack.c.h.b16 %v226
        %v260 = vunpack.c.l.b16 %v227
        %v261 = vunpack.c.h.b16 %v227
        %v262 = vunpack.c.l.b16 %v228
        %v263 = vunpack.c.h.b16 %v228
        %v264 = vunpack.c.l.b16 %v229
        %v265 = vunpack.c.h.b16 %v229
        %v266 = vpack.c.b16 %v244, %v242
        %v267 = vpack.c.b16 %v245, %v243
        %v268 = vpack.c.b16 %v248, %v246
        %v269 = vpack.c.b16 %v249, %v247
        %v270 = vpack.c.b16 %v252, %v250
        %v271 = vpack.c.b16 %v253, %v251
        %v272 = vpack.c.b16 %v256, %v254
        %v273 = vpack.c.b16 %v257, %v255
        %v274 = vpack.c.b16 %v260, %v258
        %v275 = vpack.c.b16 %v261, %v259
        %v276 = vpack.c.b16 %v264, %v262
        %v277 = vpack.c.b16 %v265, %v263
        %vm290 = vcmask 785408
        %v292 = vsel %vm290, %v217, 0
        %294 = vmatprep.subr.bf16.mxu0 %v267
        %295 = vmatpush1.bf16.msra.mxu0 %v266
        %296 = vmatprep.subr.bf16.mxu0 %v269
        %297 = vmatpush1.bf16.msra.mxu0 %v268
        %298 = vmatprep.subr.bf16.mxu0 %v271
        %299 = vmatpush1.bf16.msra.mxu0 %v270
        %300 = vmatprep.subr.bf16.mxu0 %v273
        %301 = vmatpush1.bf16.msra.mxu0 %v272
        %302 = vmatprep.subr.bf16.mxu0 %v275
        %303 = vmatpush1.bf16.msra.mxu0 %v274
        %304 = vmatprep.subr.bf16.mxu0 %v277
        %305 = vmatpush1.bf16.msra.mxu0 %v276
        %306 = vmatprep.subr.bf16.mxu0 0
        %307 = vmatpush1.bf16.msra.mxu0 0
        %308 = vmatprep.subr.bf16.mxu0 0
        %309 = vmatpush1.bf16.msra.mxu0 0
        %310 = vmatprep.subr.bf16.mxu0 0
        %311 = vmatpush1.bf16.msra.mxu0 0
        %312 = vmatprep.subr.bf16.mxu0 0
        %313 = vmatpush1.bf16.msra.mxu0 0
        %314 = vmatprep.subr.bf16.mxu0 0
        %315 = vmatpush1.bf16.msra.mxu0 0
        %316 = vmatprep.subr.bf16.mxu0 0
        %317 = vmatpush1.bf16.msra.mxu0 0
        %318 = vmatprep.subr.bf16.mxu0 0
        %319 = vmatpush1.bf16.msra.mxu0 0
        %320 = vmatprep.subr.bf16.mxu0 0
        %321 = vmatpush1.bf16.msra.mxu0 0
        %322 = vmatprep.subr.bf16.mxu0 0
        %323 = vmatpush1.bf16.msra.mxu0 0
        %324 = vmatprep.subr.bf16.mxu0 0
        %325 = vmatpush1.bf16.msra.mxu0 0
        %326 = vmatprep.mubr.bf16.mxu0 0
        %327 = vmatmul.mubr.bf16.gmra.mrb[0].mxu0 %v292
        %v328 = vpop.f32.mrb[0].mxu0
        %v329 = vadd.f32 0.0, %v328
        %v330 = vpop.f32.mrb[0].mxu0
        %v331 = vadd.f32 0.0, %v330
        %v332 = vpop.f32.mrb[0].mxu0
        %v333 = vpop.f32.mrb[0].mxu0
        %334 = vdwg.mxu0
        %337 = vrot.lane.b32.xlu0 %v329, 32
        %v338 = vpop.permute.xlu0 %337
        %339 = vrot.lane.b32.xlu0 %v331, 32
        %v340 = vpop.permute.xlu0 %339
        %vm341 = vcmask 261120
        %v342 = vsel %vm341, %v338, %v340
        %v344 = vmul.f32 %v329, %v342
        %v345 = vmul.f32 %v329, %v329
        %v346 = vmul.f32 %v331, %v331
        %v347 = vsel %vm290, %v344, %v345
        %v348 = vpack.c.bf16 %v347, %v347
        %v349 = vpack.c.bf16 %v346, %v346
        %v350 = vld [vmem:[#allocation7] sm:$0xff]
        %v351 = vld [vmem:[#allocation7 + $0x8] sm:$0xff]
        %v352 = vld [vmem:[#allocation7 + $0x10] sm:$0xff]
        %v353 = vld [vmem:[#allocation7 + $0x18] sm:$0xff]
        %v354 = vld [vmem:[#allocation7 + $0x20] sm:$0xff]
        %v355 = vld [vmem:[#allocation7 + $0x28] sm:$0xff]
        %v356 = vld [vmem:[#allocation7 + $0x30] sm:$0xff]
        %v357 = vld [vmem:[#allocation7 + $0x38] sm:$0xff]
        %v358 = vld [vmem:[#allocation7 + $0x40] sm:$0xff]
        %v359 = vld [vmem:[#allocation7 + $0x48] sm:$0xff]
        %v360 = vld [vmem:[#allocation7 + $0x50] sm:$0xff]
        %v361 = vld [vmem:[#allocation7 + $0x58] sm:$0xff]
        %v362 = vld [vmem:[#allocation7 + $0x60] sm:$0xff]
        %v363 = vld [vmem:[#allocation7 + $0x68] sm:$0xff]
        %v364 = vld [vmem:[#allocation7 + $0x70] sm:$0xff]
        %v365 = vld [vmem:[#allocation7 + $0x78] sm:$0xff]
        %v366 = vld [vmem:[#allocation7 + $0x80] sm:$0xff]
        %v367 = vld [vmem:[#allocation7 + $0x88] sm:$0xff]
        %v368 = vld [vmem:[#allocation7 + $0x90] sm:$0xff]
        %v369 = vld [vmem:[#allocation7 + $0x98] sm:$0xff]
        %v370 = vld [vmem:[#allocation7 + $0xa0] sm:$0xff]
        %v371 = vld [vmem:[#allocation7 + $0xa8] sm:$0xff]
        %v372 = vld [vmem:[#allocation7 + $0xb0] sm:$0xff]
        %v373 = vld [vmem:[#allocation7 + $0xb8] sm:$0xff]
        %v398 = vunpack.c.l.b16 %v350
        %v399 = vunpack.c.h.b16 %v350
        %v400 = vunpack.c.l.b16 %v351
        %v401 = vunpack.c.h.b16 %v351
        %v402 = vunpack.c.l.b16 %v352
        %v403 = vunpack.c.h.b16 %v352
        %v404 = vunpack.c.l.b16 %v353
        %v405 = vunpack.c.h.b16 %v353
        %v406 = vunpack.c.l.b16 %v354
        %v407 = vunpack.c.h.b16 %v354
        %v408 = vunpack.c.l.b16 %v355
        %v409 = vunpack.c.h.b16 %v355
        %v410 = vunpack.c.l.b16 %v356
        %v411 = vunpack.c.h.b16 %v356
        %v412 = vunpack.c.l.b16 %v357
        %v413 = vunpack.c.h.b16 %v357
        %v414 = vunpack.c.l.b16 %v358
        %v415 = vunpack.c.h.b16 %v358
        %v416 = vunpack.c.l.b16 %v359
        %v417 = vunpack.c.h.b16 %v359
        %v418 = vunpack.c.l.b16 %v360
        %v419 = vunpack.c.h.b16 %v360
        %v420 = vunpack.c.l.b16 %v361
        %v421 = vunpack.c.h.b16 %v361
        %v422 = vunpack.c.l.b16 %v362
        %v423 = vunpack.c.h.b16 %v362
        %v424 = vunpack.c.l.b16 %v363
        %v425 = vunpack.c.h.b16 %v363
        %v426 = vunpack.c.l.b16 %v364
        %v427 = vunpack.c.h.b16 %v364
        %v428 = vunpack.c.l.b16 %v365
        %v429 = vunpack.c.h.b16 %v365
        %v430 = vunpack.c.l.b16 %v366
        %v431 = vunpack.c.h.b16 %v366
        %v432 = vunpack.c.l.b16 %v367
        %v433 = vunpack.c.h.b16 %v367
        %v434 = vunpack.c.l.b16 %v368
        %v435 = vunpack.c.h.b16 %v368
        %v436 = vunpack.c.l.b16 %v369
        %v437 = vunpack.c.h.b16 %v369
        %v438 = vunpack.c.l.b16 %v370
        %v439 = vunpack.c.h.b16 %v370
        %v440 = vunpack.c.l.b16 %v371
        %v441 = vunpack.c.h.b16 %v371
        %v442 = vunpack.c.l.b16 %v372
        %v443 = vunpack.c.h.b16 %v372
        %v444 = vunpack.c.l.b16 %v373
        %v445 = vunpack.c.h.b16 %v373
        %v446 = vpack.c.b16 %v400, %v398
        %v447 = vpack.c.b16 %v401, %v399
        %v448 = vpack.c.b16 %v404, %v402
        %v449 = vpack.c.b16 %v405, %v403
        %v450 = vpack.c.b16 %v408, %v406
        %v451 = vpack.c.b16 %v409, %v407
        %v452 = vpack.c.b16 %v412, %v410
        %v453 = vpack.c.b16 %v413, %v411
        %v454 = vpack.c.b16 %v416, %v414
        %v455 = vpack.c.b16 %v417, %v415
        %v456 = vpack.c.b16 %v420, %v418
        %v457 = vpack.c.b16 %v421, %v419
        %v458 = vpack.c.b16 %v424, %v422
        %v459 = vpack.c.b16 %v425, %v423
        %v460 = vpack.c.b16 %v428, %v426
        %v461 = vpack.c.b16 %v429, %v427
        %v462 = vpack.c.b16 %v432, %v430
        %v463 = vpack.c.b16 %v433, %v431
        %v464 = vpack.c.b16 %v436, %v434
        %v465 = vpack.c.b16 %v437, %v435
        %v466 = vpack.c.b16 %v440, %v438
        %v467 = vpack.c.b16 %v441, %v439
        %v468 = vpack.c.b16 %v444, %v442
        %v469 = vpack.c.b16 %v445, %v443
        %vm494 = vcmask 523264
        %v496 = vsel %vm494, %v349, 0
        %498 = vmatprep.subr.bf16.mxu0 %v447
        %499 = vmatpush1.bf16.msra.mxu0 %v446
        %500 = vmatprep.subr.bf16.mxu0 %v449
        %501 = vmatpush1.bf16.msra.mxu0 %v448
        %502 = vmatprep.subr.bf16.mxu0 %v451
        %503 = vmatpush1.bf16.msra.mxu0 %v450
        %504 = vmatprep.subr.bf16.mxu0 %v453
        %505 = vmatpush1.bf16.msra.mxu0 %v452
        %506 = vmatprep.subr.bf16.mxu0 %v455
        %507 = vmatpush1.bf16.msra.mxu0 %v454
        %508 = vmatprep.subr.bf16.mxu0 %v457
        %509 = vmatpush1.bf16.msra.mxu0 %v456
        %510 = vmatprep.subr.bf16.mxu0 %v459
        %511 = vmatpush1.bf16.msra.mxu0 %v458
        %512 = vmatprep.subr.bf16.mxu0 %v461
        %513 = vmatpush1.bf16.msra.mxu0 %v460
        %514 = vmatprep.subr.bf16.mxu0 %v463
        %515 = vmatpush1.bf16.msra.mxu0 %v462
        %516 = vmatprep.subr.bf16.mxu0 %v465
        %517 = vmatpush1.bf16.msra.mxu0 %v464
        %518 = vmatprep.subr.bf16.mxu0 %v467
        %519 = vmatpush1.bf16.msra.mxu0 %v466
        %520 = vmatprep.subr.bf16.mxu0 %v469
        %521 = vmatpush1.bf16.msra.mxu0 %v468
        %522 = vmatprep.subr.bf16.mxu0 0
        %523 = vmatpush1.bf16.msra.mxu0 0
        %524 = vmatprep.subr.bf16.mxu0 0
        %525 = vmatpush1.bf16.msra.mxu0 0
        %526 = vmatprep.subr.bf16.mxu0 0
        %527 = vmatpush1.bf16.msra.mxu0 0
        %528 = vmatprep.subr.bf16.mxu0 0
        %529 = vmatpush1.bf16.msra.mxu0 0
        %530 = vmatprep.mubr.bf16.mxu0 %v496
        %531 = vmatmul.mubr.bf16.gmra.mrb[0].mxu0 %v348
        %v532 = vpop.f32.mrb[0].mxu0
        %v533 = vadd.f32 0.0, %v532
        %v534 = vpop.f32.mrb[0].mxu0
        %v535 = vadd.f32 0.0, %v534
        %v536 = vpop.f32.mrb[0].mxu0
        %v537 = vpop.f32.mrb[0].mxu0
        %538 = vdwg.mxu0
        %v539 = vmax.f32 %v533, 1e-12
        %v540 = vmax.f32 %v535, 1e-12
        %v541 = vrsqrt.pop %v539
        %v542 = vrsqrt.pop %v540
        %545 = vrot.lane.b32.xlu0 %v541, 32
        %v546 = vpop.permute.xlu0 %545
        %547 = vrot.lane.b32.xlu0 %v542, 32
        %v548 = vpop.permute.xlu0 %547
        %v549 = vsel %vm341, %v546, %v548
        %v551 = vmul.f32 %v533, %v549
        %v552 = vmul.f32 %v551, %v342
        %v553 = vsub.f32 %v329, %v552
        %vm554 = vcmp.ge.f32.partialorder %v533, 0.0
        %v555 = vsel %vm554, %v329, %v553
        %556 = vst.msk [vmem:[%s214] sm:$0xff] %vm290, %v555
        %s557 = sand.u32 %s97, 1
        %s558 = scalar_lea.sflag [#allocation4], %s557
        %s559 = sand.u32 %s97, 1
        %s560 = smul.addr %s559, 8
        %s561 = scalar_lea.vmem [#allocation8], %s560
        // Predicated region
        $region45: #{tpu_custom_call.1} parent=31 // pred_check
          %p562 = pneg %p107
        $region46: #{tpu_custom_call.1} parent=31 // pred_check_branch
          %564 = sbr.rel (%p562) target = $region48
        $region47: #{tpu_custom_call.1} parent=31 // pred_region
          %s566 = ssub.s32 128, 128
          %567 = vsyncadd %s558, %s566
          %s568 = smul.addr %s21, 128
          %s569 = scalar_lea.hbm %s3, %s568
          %s571 = sshll.u32 %s561, 4
          %s572 = int_to_ptr.vmem [resolvable:$true] %s571
          %574 = dma.vmem_to_hbm [thread:$0]  %s572, 128, %s569, %s558
        $region48: #{tpu_custom_call.1} parent=31 // pred_fallthru
          _
      $region32: #{tpu_custom_call.1} parent=5 // pred_fallthru
        _
      %p575 = scmp.le.s32.totalorder 2, %s16
      // Predicated region
      $region49: #{tpu_custom_call.1} parent=5 // pred_check
        %p576 = pneg %p575
      $region50: #{tpu_custom_call.1} parent=5 // pred_check_branch
        %578 = sbr.rel (%p576) target = $region52
      $region51: #{tpu_custom_call.1} parent=5 // pred_region
        %s579 = ssub.s32 %s16, 2
        // Predicated region
        $region53: #{tpu_custom_call.1} parent=51 // pred_check
          %p580 = pneg %p113
        $region54: #{tpu_custom_call.1} parent=51 // pred_check_branch
          %582 = sbr.rel (%p580) target = $region56
        $region55: #{tpu_custom_call.1} parent=51 // pred_region
          %s583 = sand.u32 %s98, 1
          %s584 = scalar_lea.sflag [#allocation4], %s583
          %s585 = sand.u32 %s98, 1
          %s586 = smul.addr %s585, 8
          %s587 = scalar_lea.vmem [#allocation8], %s586
          %588 = dma.done %s584, 128
        $region56: #{tpu_custom_call.1} parent=51 // pred_fallthru
          _
      $region52: #{tpu_custom_call.1} parent=5 // pred_fallthru
        _
    $region6: #{tpu_custom_call.1} parent=1 // loop_footer
      %s20 = sadd.s32 1, %s16
    $region7: #{tpu_custom_call.1} parent=1 // loop_footer_branch
      %15 = sbr.rel target = $region3
    $region8: #{tpu_custom_call.1} parent=1 // loop_exit
      _
    %589 = vsyncpa [#allocation3], 1
    %s590 = scalar_lea.sflag [#allocation3], 1
    %591 = vsyncpa %s590, 1
    %592 = vsyncpa [#allocation6], 1
    %593 = vsyncpa [#allocation4], 1
    %s594 = scalar_lea.sflag [#allocation4], 1
    %595 = vsyncpa %s594, 1

</llo_original>
